<compile_context>
chip_gen: v5e
topology: v5e:2x2
jax: 0.10.0
libtpu: 0.0.40
codegen_flags: <defaults>
</compile_context>

<pallas_src>
import functools

import jax
import jax.numpy as jnp
from jax.experimental import pallas as pl
from jax.experimental.pallas import tpu as pltpu


def _round_up(x, m):
    return (x + m - 1) // m * m


def _onehot_count_kernel(x_ref, o_ref, acc_ref, *, chunk):
    """Accumulate per-class counts for one (TB, TC) output tile.

    x_ref:   (TB, TS) int32 class indices (current S tile)
    o_ref:   (TB, TC) float32 output tile
    acc_ref: (TB, TC) int32 resident accumulator (VMEM scratch)
    """
    si = pl.program_id(2)

    @pl.when(si == 0)
    def _():
        acc_ref[...] = jnp.zeros_like(acc_ref)

    x = x_ref[...]                                    # (TB, TS) int32
    _, ts = x_ref.shape
    tc = o_ref.shape[-1]

    # Absolute class ids covered by this C tile, along the lane axis.
    c_base = pl.program_id(1) * tc
    cls = jax.lax.broadcasted_iota(jnp.int32, (1, 1, tc), 2) + c_base   # (1,1,TC)

    acc = acc_ref[...]                                # (TB, TC) int32
    n_chunks = ts // chunk
    # Walk the S tile in small static sub-chunks: compare -> sublane reduce ->
    # accumulate. Accumulate in int32; cast to f32 only once at the end.
    for ci in range(n_chunks):
        xs = x[:, ci * chunk:(ci + 1) * chunk]        # (TB, chunk), static slice
        eq = (xs[:, :, None] == cls).astype(jnp.int32)  # (TB, chunk, TC)
        acc = acc + jnp.sum(eq, axis=1)               # (TB, TC)
    acc_ref[...] = acc

    @pl.when(si == pl.num_programs(2) - 1)
    def _():
        o_ref[...] = acc.astype(jnp.float32)          # single lane-dense store


def one_hot_like(x, num_classes):
    """x: (B, S) integer class indices. Returns (B, num_classes) float32 counts."""
    B, S = x.shape
    C = num_classes
    x = x.astype(jnp.int32)

    CHUNK = 8
    # ---- tile sizes: (8,128)-aligned, lane-dense output ----
    TB = 64 if B >= 64 else _round_up(B, 8)           # sublane-aligned batch tile
    B_pad = _round_up(B, TB)

    C_pad = _round_up(C, 128)                         # lane-dense classes
    TC = C_pad if C_pad <= 512 else 512
    C_pad = _round_up(C_pad, TC)

    TS = 256 if S > 256 else _round_up(S, CHUNK)      # S reduction tile
    S_pad = _round_up(S, TS)

    # Pad: extra sequence slots get index -1 (never matches any class -> 0
    # counts); extra batch rows / class columns are sliced off below.
    x_p = jnp.pad(x, ((0, B_pad - B), (0, S_pad - S)), constant_values=-1)

    grid = (B_pad // TB, C_pad // TC, S_pad // TS)    # reduction axis (S) last

    kernel = functools.partial(_onehot_count_kernel, chunk=CHUNK)

    out = pl.pallas_call(
        kernel,
        out_shape=jax.ShapeDtypeStruct((B_pad, C_pad), jnp.float32),
        grid_spec=pltpu.PrefetchScalarGridSpec(
            num_scalar_prefetch=0,
            grid=grid,
            in_specs=[pl.BlockSpec((TB, TS), lambda bi, ci, si: (bi, si))],
            out_specs=pl.BlockSpec((TB, TC), lambda bi, ci, si: (bi, ci)),
            scratch_shapes=[pltpu.VMEM((TB, TC), jnp.int32)],
        ),
        compiler_params=pltpu.CompilerParams(
            dimension_semantics=("parallel", "parallel", "arbitrary"),
            vmem_limit_bytes=32 * 1024 * 1024,
        ),
        cost_estimate=pl.CostEstimate(
            flops=2 * B_pad * S_pad * C_pad,          # compares + adds
            transcendentals=0,
            bytes_accessed=4 * (B_pad * S_pad + B_pad * C_pad),
        ),
    )(x_p)

    return out[:B, :C]


if __name__ == "__main__":
    key = jax.random.PRNGKey(0)
    B, S, C = 2, 8, 32          # batch=2, seq=8, num_classes=32
    x = jax.random.randint(key, (B, S), 0, C, dtype=jnp.int32)

    out = jax.block_until_ready(one_hot_like(x, C))

    # Pure-JAX reference check of the PyTorch semantics.
    ref = jnp.sum(jax.nn.one_hot(x, C, dtype=jnp.float32), axis=1)
    assert out.shape == (B, C) and out.dtype == jnp.float32
    assert bool(jnp.all(out == ref))

    print("KERNEL_OK")
</pallas_src>

<mosaic_0001>
module attributes {stable_mosaic.version = 11 : i64} {
  func.func @_onehot_count_kernel(%arg0: i32, %arg1: i32, %arg2: i32, %arg3: memref<8x8xi32, #tpu.memory_space<vmem>>, %arg4: memref<8x128xf32, #tpu.memory_space<vmem>>, %arg5: memref<8x128xi32, #tpu.memory_space<vmem>>) attributes {dimension_semantics = [#tpu.dimension_semantics<parallel>, #tpu.dimension_semantics<parallel>, #tpu.dimension_semantics<arbitrary>], iteration_bounds = array<i64: 1, 1, 1>, scalar_prefetch = 0 : i64, scratch_operands = 1 : i64, tpu.core_type = #tpu.core_type<tc>, window_params = [{transform_indices = @transform_0, window_bounds = array<i64: 8, 8>}, {transform_indices = @transform_1, window_bounds = array<i64: 8, 128>}]} {
    %c0_i32 = arith.constant 0 : i32
    %0 = arith.cmpi eq, %arg2, %c0_i32 : i32
    %1 = arith.extui %0 : i1 to i32
    %c0_i32_0 = arith.constant 0 : i32
    %2 = arith.cmpi ne, %1, %c0_i32_0 : i32
    scf.if %2 {
      %c0_i32_8 = arith.constant 0 : i32
      %20 = vector.broadcast %c0_i32_8 : i32 to vector<8x128xi32>
      %c0_9 = arith.constant 0 : index
      %c0_10 = arith.constant 0 : index
      %21 = vector.load %arg5[%c0_9, %c0_10] : memref<8x128xi32, #tpu.memory_space<vmem>>, vector<8x128xi32>
      tpu.vector_store %arg5[%c0_9, %c0_10], %20 {strides = array<i32>} : memref<8x128xi32, #tpu.memory_space<vmem>>, vector<8x128xi32>,
    } else {
    }
    %c0 = arith.constant 0 : index
    %c0_1 = arith.constant 0 : index
    %3 = vector.load %arg3[%c0, %c0_1] : memref<8x8xi32, #tpu.memory_space<vmem>>, vector<8x8xi32>
    %c128_i32 = arith.constant 128 : i32
    %4 = arith.muli %arg1, %c128_i32 : i32
    %5 = tpu.iota {dimensions = array<i32: 2>} : vector<1x1x128xi32>
    %6 = vector.broadcast %4 : i32 to vector<1x1x128xi32>
    %7 = arith.addi %5, %6 : vector<1x1x128xi32>
    %c0_2 = arith.constant 0 : index
    %c0_3 = arith.constant 0 : index
    %8 = vector.load %arg5[%c0_2, %c0_3] : memref<8x128xi32, #tpu.memory_space<vmem>>, vector<8x128xi32>
    %9 = vector.shape_cast %3 : vector<8x8xi32> to vector<8x8x1xi32>
    %10 = vector.broadcast %9 : vector<8x8x1xi32> to vector<8x8x128xi32>
    %11 = vector.broadcast %7 : vector<1x1x128xi32> to vector<8x8x128xi32>
    %12 = arith.cmpi eq, %10, %11 : vector<8x8x128xi32>
    %13 = arith.extui %12 : vector<8x8x128xi1> to vector<8x8x128xi32>
    %cst = arith.constant dense<0> : vector<8x128xi32>
    %14 = vector.multi_reduction <add>, %13, %cst [1] : vector<8x8x128xi32> to vector<8x128xi32>
    %15 = arith.addi %8, %14 : vector<8x128xi32>
    %c0_4 = arith.constant 0 : index
    %c0_5 = arith.constant 0 : index
    %16 = vector.load %arg5[%c0_4, %c0_5] : memref<8x128xi32, #tpu.memory_space<vmem>>, vector<8x128xi32>
    tpu.vector_store %arg5[%c0_4, %c0_5], %15 {strides = array<i32>} : memref<8x128xi32, #tpu.memory_space<vmem>>, vector<8x128xi32>,
    %c0_i32_6 = arith.constant 0 : i32
    %17 = arith.cmpi eq, %arg2, %c0_i32_6 : i32
    %18 = arith.extui %17 : i1 to i32
    %c0_i32_7 = arith.constant 0 : i32
    %19 = arith.cmpi ne, %18, %c0_i32_7 : i32
    scf.if %19 {
      %20 = arith.sitofp %15 : vector<8x128xi32> to vector<8x128xf32>
      %c0_8 = arith.constant 0 : index
      %c0_9 = arith.constant 0 : index
      %21 = vector.load %arg4[%c0_8, %c0_9] : memref<8x128xf32, #tpu.memory_space<vmem>>, vector<8x128xf32>
      tpu.vector_store %arg4[%c0_8, %c0_9], %20 {strides = array<i32>} : memref<8x128xf32, #tpu.memory_space<vmem>>, vector<8x128xf32>,
    } else {
    }
    return
  }
  func.func @transform_0(%arg0: i32, %arg1: i32, %arg2: i32) -> (i32, i32) {
    %c0_i32 = arith.constant 0 : i32
    return %arg0, %arg2 : i32, i32
  }
  func.func @transform_1(%arg0: i32, %arg1: i32, %arg2: i32) -> (i32, i32) {
    %c0_i32 = arith.constant 0 : i32
    return %arg0, %arg1 : i32, i32
  }
}

</mosaic_0001>

<llo_original>
// kernel: tpu_custom_call.1
$region0: #{tpu_custom_call.1}
  #allocation0 [shape = 'u32[]', space=smem, size = 0x4, offset = 0x4, fixed_abs, tag = 'smem constant byte address 0x4 - core index']
  #allocation1 [shape = 'u32[72,128]{1,0:T(1,128)}', space=vmem, size = 0x9000, scoped, tag = 'internal scratch']
  #allocation2 [shape = 's32[8,128]{1,0:T(8,128)}', space=vmem, size = 0x1000, scoped, tag = 'scratch operand']
  %s0 = inlined_call_operand.hbm [shape: s32[8,8], index: 0, kind: input, shape index: {}]
  %s1 = inlined_call_operand.hbm [shape: f32[8,128], index: 1, kind: output, shape index: {}]
  %s2 = sld [smem:[#allocation0]]
  $region26: #{tpu_custom_call.1} parent=0
    _
  %s4 = ssub.s32 1, %s2
  %s5 = scalar_select 0, %s4, %s2
  $region1: #{tpu_custom_call.1} parent=0
    #allocation3 [shape = 'u8[4096]{0}', space=vmem, size = 0x1000, scoped, tag = 'input window, operand 0, single buffered']
    #allocation4 [shape = 's32[1]{0}', space=sflag, size = 0x4, scoped, tag = 'scoped memory for tpu_custom_call.1']
    #allocation5 [shape = 's32[1]{0}', space=sflag, size = 0x4, scoped, tag = 'scoped memory for tpu_custom_call.1']
    #allocation6 [shape = 'u8[4096]{0}', space=vmem, size = 0x1000, scoped, tag = 'output window, operand 0, single buffered']
    %6 = vsyncpa [#allocation4], 0
    %7 = vsyncpa [#allocation5], 0
    // Predicated region
    $region2: #{tpu_custom_call.1} parent=1 // pred_check
      _
    $region3: #{tpu_custom_call.1} parent=1 // pred_check_branch
      %9 = sbr.rel (0) target = $region5
    $region4: #{tpu_custom_call.1} parent=1 // pred_region
      %11 = vsyncadd [#allocation4], 0
      %s13 = sshll.u32 %s0, 4
      %s14 = int_to_ptr.hbm [resolvable:$true] %s13
      %s15 = sshll.u32 [#allocation3], 4
      %s16 = int_to_ptr.vmem [resolvable:$true] %s15
      %18 = dma.hbm_to_vmem [thread:$0]  %s14, 128, %s16, [#allocation4]
    $region5: #{tpu_custom_call.1} parent=1 // pred_fallthru
      _
    // Predicated region
    $region6: #{tpu_custom_call.1} parent=1 // pred_check
      _
    $region7: #{tpu_custom_call.1} parent=1 // pred_check_branch
      %20 = sbr.rel (0) target = $region9
    $region8: #{tpu_custom_call.1} parent=1 // pred_region
      %22 = dma.done [#allocation4], 128
    $region9: #{tpu_custom_call.1} parent=1 // pred_fallthru
      _
    %p23 = scmp.eq.s32.totalorder 0, 0
    // Predicated region
    $region10: #{tpu_custom_call.1} parent=1 // pred_check
      %p24 = pneg %p23
    $region11: #{tpu_custom_call.1} parent=1 // pred_check_branch
      %26 = sbr.rel (%p24) target = $region13
    $region12: #{tpu_custom_call.1} parent=1 // pred_region
      %27 = vst [vmem:[#allocation2] sm:$0xff] 0
    $region13: #{tpu_custom_call.1} parent=1 // pred_fallthru
      _
    %v28 = vld [vmem:[#allocation3] sm:$0xff]
    %s29 = smul.u32 0, 128
    %v30 = vlaneseq
    %v31 = vand.u32 %v30, 127
    %v32 = vstv %s29
    %v33 = vadd.s32 %v31, %v32
    %v34 = vld [vmem:[#allocation2] sm:$0xff]
    %v35 = vperm.slane %v28, 0
    %v36 = vlaneseq
    %v37 = vshrl.u32 %v36, 7
    %39 = vset.pattern.permute.xlu0 %v37
    %40 = vperm.xlu0 %39, %v35
    %v41 = vpop.permute.xlu0 %40
    %v42 = vperm.slane %v28, 1
    %v43 = vlaneseq
    %v44 = vshrl.u32 %v43, 7
    %46 = vset.pattern.permute.xlu0 %v44
    %47 = vperm.xlu0 %46, %v42
    %v48 = vpop.permute.xlu0 %47
    %v49 = vperm.slane %v28, 2
    %v50 = vlaneseq
    %v51 = vshrl.u32 %v50, 7
    %53 = vset.pattern.permute.xlu0 %v51
    %54 = vperm.xlu0 %53, %v49
    %v55 = vpop.permute.xlu0 %54
    %v56 = vperm.slane %v28, 3
    %v57 = vlaneseq
    %v58 = vshrl.u32 %v57, 7
    %60 = vset.pattern.permute.xlu0 %v58
    %61 = vperm.xlu0 %60, %v56
    %v62 = vpop.permute.xlu0 %61
    %v63 = vperm.slane %v28, 4
    %v64 = vlaneseq
    %v65 = vshrl.u32 %v64, 7
    %67 = vset.pattern.permute.xlu0 %v65
    %68 = vperm.xlu0 %67, %v63
    %v69 = vpop.permute.xlu0 %68
    %v70 = vperm.slane %v28, 5
    %v71 = vlaneseq
    %v72 = vshrl.u32 %v71, 7
    %74 = vset.pattern.permute.xlu0 %v72
    %75 = vperm.xlu0 %74, %v70
    %v76 = vpop.permute.xlu0 %75
    %v77 = vperm.slane %v28, 6
    %v78 = vlaneseq
    %v79 = vshrl.u32 %v78, 7
    %81 = vset.pattern.permute.xlu0 %v79
    %82 = vperm.xlu0 %81, %v77
    %v83 = vpop.permute.xlu0 %82
    %v84 = vperm.slane %v28, 7
    %v85 = vlaneseq
    %v86 = vshrl.u32 %v85, 7
    %88 = vset.pattern.permute.xlu0 %v86
    %89 = vperm.xlu0 %88, %v84
    %v90 = vpop.permute.xlu0 %89
    %vm91 = vcmp.eq.s32.totalorder %v41, %v33
    %vm92 = vcmp.eq.s32.totalorder %v48, %v33
    %vm93 = vcmp.eq.s32.totalorder %v55, %v33
    %vm94 = vcmp.eq.s32.totalorder %v62, %v33
    %vm95 = vcmp.eq.s32.totalorder %v69, %v33
    %vm96 = vcmp.eq.s32.totalorder %v76, %v33
    %vm97 = vcmp.eq.s32.totalorder %v83, %v33
    %vm98 = vcmp.eq.s32.totalorder %v90, %v33
    %v99 = vsel %vm91, 1, 0
    %v100 = vsel %vm92, 1, 0
    %v101 = vsel %vm93, 1, 0
    %v102 = vsel %vm94, 1, 0
    %v103 = vsel %vm95, 1, 0
    %v104 = vsel %vm96, 1, 0
    %v105 = vsel %vm97, 1, 0
    %v106 = vsel %vm98, 1, 0
    %v107 = vrot.slane %v99, 4
    %v108 = vadd.s32 %v99, %v107
    %v109 = vrot.slane %v108, 2
    %v110 = vadd.s32 %v108, %v109
    %v111 = vrot.slane %v110, 1
    %v112 = vadd.s32 %v110, %v111
    %v113 = vrot.slane %v100, 4
    %v114 = vadd.s32 %v100, %v113
    %v115 = vrot.slane %v114, 2
    %v116 = vadd.s32 %v114, %v115
    %v117 = vrot.slane %v116, 1
    %v118 = vadd.s32 %v116, %v117
    %v119 = vrot.slane %v101, 4
    %v120 = vadd.s32 %v101, %v119
    %v121 = vrot.slane %v120, 2
    %v122 = vadd.s32 %v120, %v121
    %v123 = vrot.slane %v122, 1
    %v124 = vadd.s32 %v122, %v123
    %v125 = vrot.slane %v102, 4
    %v126 = vadd.s32 %v102, %v125
    %v127 = vrot.slane %v126, 2
    %v128 = vadd.s32 %v126, %v127
    %v129 = vrot.slane %v128, 1
    %v130 = vadd.s32 %v128, %v129
    %v131 = vrot.slane %v103, 4
    %v132 = vadd.s32 %v103, %v131
    %v133 = vrot.slane %v132, 2
    %v134 = vadd.s32 %v132, %v133
    %v135 = vrot.slane %v134, 1
    %v136 = vadd.s32 %v134, %v135
    %v137 = vrot.slane %v104, 4
    %v138 = vadd.s32 %v104, %v137
    %v139 = vrot.slane %v138, 2
    %v140 = vadd.s32 %v138, %v139
    %v141 = vrot.slane %v140, 1
    %v142 = vadd.s32 %v140, %v141
    %v143 = vrot.slane %v105, 4
    %v144 = vadd.s32 %v105, %v143
    %v145 = vrot.slane %v144, 2
    %v146 = vadd.s32 %v144, %v145
    %v147 = vrot.slane %v146, 1
    %v148 = vadd.s32 %v146, %v147
    %v149 = vrot.slane %v106, 4
    %v150 = vadd.s32 %v106, %v149
    %v151 = vrot.slane %v150, 2
    %v152 = vadd.s32 %v150, %v151
    %v153 = vrot.slane %v152, 1
    %v154 = vadd.s32 %v152, %v153
    %vm155 = vcmask 1041409
    %v156 = vsel %vm155, %v118, %v112
    %vm157 = vcmask 1042434
    %v158 = vsel %vm157, %v124, %v156
    %vm159 = vcmask 1043459
    %v160 = vsel %vm159, %v130, %v158
    %vm161 = vcmask 1044484
    %v162 = vsel %vm161, %v136, %v160
    %vm163 = vcmask 1045509
    %v164 = vsel %vm163, %v142, %v162
    %vm165 = vcmask 1046534
    %v166 = vsel %vm165, %v148, %v164
    %vm167 = vcmask 1047559
    %v168 = vsel %vm167, %v154, %v166
    %v169 = vadd.s32 %v34, %v168
    %170 = vst [vmem:[#allocation2] sm:$0xff] %v169
    // Predicated region
    $region14: #{tpu_custom_call.1} parent=1 // pred_check
      %p171 = pneg %p23
    $region15: #{tpu_custom_call.1} parent=1 // pred_check_branch
      %173 = sbr.rel (%p171) target = $region17
    $region16: #{tpu_custom_call.1} parent=1 // pred_region
      %v174 = vcvt.s32.f32 %v169
      %175 = vst [vmem:[#allocation6] sm:$0xff] %v174
    $region17: #{tpu_custom_call.1} parent=1 // pred_fallthru
      _
    // Predicated region
    $region18: #{tpu_custom_call.1} parent=1 // pred_check
      _
    $region19: #{tpu_custom_call.1} parent=1 // pred_check_branch
      %177 = sbr.rel (0) target = $region21
    $region20: #{tpu_custom_call.1} parent=1 // pred_region
      %179 = vsyncadd [#allocation5], 0
      %s181 = sshll.u32 [#allocation6], 4
      %s182 = int_to_ptr.vmem [resolvable:$true] %s181
      %s183 = sshll.u32 %s1, 4
      %s184 = int_to_ptr.hbm [resolvable:$true] %s183
      %186 = dma.vmem_to_hbm [thread:$0]  %s182, 128, %s184, [#allocation5]
    $region21: #{tpu_custom_call.1} parent=1 // pred_fallthru
      _
    // Predicated region
    $region22: #{tpu_custom_call.1} parent=1 // pred_check
      _
    $region23: #{tpu_custom_call.1} parent=1 // pred_check_branch
      %188 = sbr.rel (0) target = $region25
    $region24: #{tpu_custom_call.1} parent=1 // pred_region
      %190 = dma.done [#allocation5], 128
    $region25: #{tpu_custom_call.1} parent=1 // pred_fallthru
      _
    %191 = vsyncpa [#allocation4], 1
    %192 = vsyncpa [#allocation5], 1

</llo_original>
